<compile_context>
chip_gen: v7x
topology: tpu7x:2x2x1
jax: 0.10.0
libtpu: 0.0.40
codegen_flags: <defaults>
</compile_context>

<pallas_src>
import functools

import jax
import jax.numpy as jnp
from jax.experimental import pallas as pl
from jax.experimental.pallas import tpu as pltpu


def _gmap_single_pass_kernel(x_ref, o_ref):
    # Whole H*W extent is resident in the tile: one reduction per row block.
    x = x_ref[...].astype(jnp.float32)                       # (row_block, hw)
    row_max = jnp.max(x, axis=-1, keepdims=True)
    row_mean = jnp.sum(x, axis=-1, keepdims=True) * (1.0 / x.shape[-1])
    o_ref[...] = (row_max + row_mean).astype(o_ref.dtype)


def _gmap_multi_pass_kernel(x_ref, o_ref, max_sc, sum_sc, *, hw_total, hw_tile):
    # H*W is tiled along the last ("arbitrary") grid axis; running max / sum
    # live in VMEM scratch and are finalized on the last HW step.
    k = pl.program_id(1)

    @pl.when(k == 0)
    def _init():
        max_sc[...] = jnp.full_like(max_sc, -jnp.inf)
        sum_sc[...] = jnp.zeros_like(sum_sc)

    x = x_ref[...].astype(jnp.float32)                       # (row_block, hw_tile)

    if hw_total % hw_tile != 0:
        # Mask the out-of-bounds lane tail of the last HW tile.
        col = jax.lax.broadcasted_iota(jnp.int32, x.shape, 1) + k * hw_tile
        valid = col < hw_total
        x_max = jnp.where(valid, x, -jnp.inf)
        x_sum = jnp.where(valid, x, 0.0)
    else:
        x_max, x_sum = x, x

    max_sc[...] = jnp.maximum(max_sc[...], jnp.max(x_max, axis=-1, keepdims=True))
    sum_sc[...] = sum_sc[...] + jnp.sum(x_sum, axis=-1, keepdims=True)

    @pl.when(k == pl.num_programs(1) - 1)
    def _finalize():
        o_ref[...] = (max_sc[...] + sum_sc[...] * (1.0 / hw_total)).astype(o_ref.dtype)


def _choose_tiles(rows, hw, in_bytes, out_bytes, vmem_tile_budget_bytes):
    """Pick (row_block, hw_tile) so the pipelined working set fits the budget."""
    # Sublane packing: 8 rows per vreg for 32-bit, 16 for bf16, 32 for int8/fp8.
    sublane = 8 * max(1, 4 // in_bytes)

    def lane_pad(n):
        return ((n + 127) // 128) * 128

    def rows_for(hw_t):
        per_row = (
            2 * lane_pad(hw_t) * in_bytes   # double-buffered input tile
            + 2 * 128 * out_bytes           # double-buffered (rb, 1) output (lane-padded)
            + 2 * 128 * 4                   # two f32 accumulators (lane-padded)
        )
        rb = vmem_tile_budget_bytes // per_row
        return max(sublane, (rb // sublane) * sublane)

    hw_tile = hw                        # whole-row reduction whenever it fits
    row_block = rows_for(hw_tile)
    if row_block < 256:
        # Very large feature maps: tile H*W (multiple of 128 lanes) so the row
        # block stays wide enough to amortize the ~0.35us per-grid-step cost.
        target_rows = 512
        hw_tile = (vmem_tile_budget_bytes // 2 // (target_rows * in_bytes)) // 128 * 128
        hw_tile = max(128, min(hw_tile, hw))
        row_block = rows_for(hw_tile)

    if row_block >= rows:
        row_block = rows                # single full-extent block (always legal)
    return row_block, hw_tile


def gmap(x, *, vmem_tile_budget_bytes=16 << 20, vmem_limit_bytes=32 << 20):
    """x: (N, C, H, W) -> (N, C, 1, 1), global max pool + global avg pool."""
    n, c, h, w = x.shape
    rows = n * c
    hw = h * w
    x2d = x.reshape(rows, hw)

    in_bytes = x.dtype.itemsize
    out_dtype = x.dtype
    out_bytes = jnp.dtype(out_dtype).itemsize

    row_block, hw_tile = _choose_tiles(
        rows, hw, in_bytes, out_bytes, vmem_tile_budget_bytes)
    num_row_blocks = pl.cdiv(rows, row_block)
    num_hw_tiles = pl.cdiv(hw, hw_tile)
    # Output is padded up to whole row blocks; the garbage tail rows produced
    # by the partial last input block land there and are sliced away below.
    total_out_rows = num_row_blocks * row_block

    if num_hw_tiles == 1:
        kernel = _gmap_single_pass_kernel
        scratch_shapes = []
    else:
        kernel = functools.partial(
            _gmap_multi_pass_kernel, hw_total=hw, hw_tile=hw_tile)
        scratch_shapes = [
            pltpu.VMEM((row_block, 1), jnp.float32),   # running max
            pltpu.VMEM((row_block, 1), jnp.float32),   # running sum
        ]

    cost = pl.CostEstimate(
        flops=2 * rows * hw,                           # one max + one add per element
        transcendentals=0,
        bytes_accessed=rows * hw * in_bytes + total_out_rows * out_bytes,
    )

    out2d = pl.pallas_call(
        kernel,
        out_shape=jax.ShapeDtypeStruct((total_out_rows, 1), out_dtype),
        grid_spec=pltpu.PrefetchScalarGridSpec(
            num_scalar_prefetch=0,
            grid=(num_row_blocks, num_hw_tiles),
            in_specs=[pl.BlockSpec((row_block, hw_tile), lambda i, k: (i, k))],
            out_specs=pl.BlockSpec((row_block, 1), lambda i, k: (i, 0)),
            scratch_shapes=scratch_shapes,
        ),
        compiler_params=pltpu.CompilerParams(
            # rows axis shards across v7x's two TensorCores; the HW axis is a
            # sequential reduction (output block revisited across it).
            dimension_semantics=("parallel", "arbitrary"),
            vmem_limit_bytes=vmem_limit_bytes,
        ),
        cost_estimate=cost,
    )(x2d)

    return out2d[:rows].reshape(n, c, 1, 1)


def gmap_reference(x):
    gmp = jnp.max(x, axis=(2, 3), keepdims=True)
    gap = jnp.mean(x, axis=(2, 3), keepdims=True)
    return gmp + gap


if __name__ == "__main__":
    key = jax.random.PRNGKey(0)
    x = jax.random.normal(key, (2, 4, 16, 16), dtype=jnp.float32)

    out = jax.block_until_ready(gmap(x))
    ref = gmap_reference(x)

    assert out.shape == (2, 4, 1, 1), out.shape
    assert jnp.allclose(out, ref, atol=1e-5, rtol=1e-5), float(
        jnp.max(jnp.abs(out - ref)))
    print("KERNEL_OK")
</pallas_src>

<mosaic_0001>
module attributes {stable_mosaic.version = 11 : i64} {
  func.func @_gmap_single_pass_kernel(%arg0: i32, %arg1: i32, %arg2: memref<8x256xf32, #tpu.memory_space<vmem>>, %arg3: memref<8x1xf32, #tpu.memory_space<vmem>>) attributes {dimension_semantics = [#tpu.dimension_semantics<parallel>, #tpu.dimension_semantics<arbitrary>], iteration_bounds = array<i64: 1, 1>, scalar_prefetch = 0 : i64, scratch_operands = 0 : i64, tpu.core_type = #tpu.core_type<tc>, window_params = [{transform_indices = @transform_0, window_bounds = array<i64: 8, 256>}, {transform_indices = @transform_1, window_bounds = array<i64: 8, 1>}]} {
    %c0 = arith.constant 0 : index
    %c0_0 = arith.constant 0 : index
    %0 = vector.load %arg2[%c0, %c0_0] : memref<8x256xf32, #tpu.memory_space<vmem>>, vector<8x256xf32>
    %cst = arith.constant dense<0xFF800000> : vector<8xf32>
    %1 = vector.multi_reduction <maximumf>, %0, %cst [1] : vector<8x256xf32> to vector<8xf32>
    %2 = vector.shape_cast %1 : vector<8xf32> to vector<8x1xf32>
    %cst_1 = arith.constant dense<0.000000e+00> : vector<8xf32>
    %3 = vector.multi_reduction <add>, %0, %cst_1 [1] : vector<8x256xf32> to vector<8xf32>
    %4 = vector.shape_cast %3 : vector<8xf32> to vector<8x1xf32>
    %cst_2 = arith.constant 3.906250e-03 : f32
    %5 = vector.broadcast %cst_2 : f32 to vector<8x1xf32>
    %6 = arith.mulf %4, %5 : vector<8x1xf32>
    %7 = arith.addf %2, %6 : vector<8x1xf32>
    %c0_3 = arith.constant 0 : index
    %c0_4 = arith.constant 0 : index
    %8 = vector.load %arg3[%c0_3, %c0_4] : memref<8x1xf32, #tpu.memory_space<vmem>>, vector<8x1xf32>
    tpu.vector_store %arg3[%c0_3, %c0_4], %7 {strides = array<i32>} : memref<8x1xf32, #tpu.memory_space<vmem>>, vector<8x1xf32>,
    return
  }
  func.func @transform_0(%arg0: i32, %arg1: i32) -> (i32, i32) {
    %c0_i32 = arith.constant 0 : i32
    return %arg0, %arg1 : i32, i32
  }
  func.func @transform_1(%arg0: i32, %arg1: i32) -> (i32, i32) {
    %c0_i32 = arith.constant 0 : i32
    %c0_i32_0 = arith.constant 0 : i32
    return %arg0, %c0_i32 : i32, i32
  }
}

</mosaic_0001>

<llo_original>
// kernel: tpu_custom_call.1
$region0: #{tpu_custom_call.1}
  #allocation0 [shape = 'u32[]', space=smem, size = 0x4, offset = 0x4, fixed_abs, tag = 'smem constant byte address 0x4 - core index']
  #allocation1 [shape = 'u32[144,128]{1,0:T(1,128)}', space=vmem, size = 0x12000, scoped, tag = 'internal scratch']
  %s0 = inlined_call_operand.hbm [shape: f32[8,256], index: 0, kind: input, shape index: {}]
  %s1 = inlined_call_operand.vmem [shape: f32[8,1], index: 1, kind: output, shape index: {}]
  %s2 = sld [smem:[#allocation0]]
  $region18: #{tpu_custom_call.1} parent=0
    _
  %s4 = ssub.s32 1, %s2
  %s5 = scalar_select 0, %s4, %s2
  $region1: #{tpu_custom_call.1} parent=0
    #allocation2 [shape = 'u8[8192]{0}', space=vmem, size = 0x2000, scoped, tag = 'input window, operand 0, single buffered']
    #allocation3 [shape = 's32[1]{0}', space=sflag, size = 0x4, scoped, tag = 'scoped memory for tpu_custom_call.1']
    %6 = vsyncpa [#allocation3], 0
    // Predicated region
    $region2: #{tpu_custom_call.1} parent=1 // pred_check
      _
    $region3: #{tpu_custom_call.1} parent=1 // pred_check_branch
      %8 = sbr.rel (0) target = $region5
    $region4: #{tpu_custom_call.1} parent=1 // pred_region
      %s10 = ssub.s32 256, 256
      %11 = vsyncadd [#allocation3], %s10
      %s13 = sshll.u32 [#allocation2], 4
      %s14 = int_to_ptr.vmem [resolvable:$true] %s13
      %16 = dma.hbm_to_vmem [thread:$0]  %s0, 256, %s14, [#allocation3]
    $region5: #{tpu_custom_call.1} parent=1 // pred_fallthru
      _
    // Predicated region
    $region6: #{tpu_custom_call.1} parent=1 // pred_check
      _
    $region7: #{tpu_custom_call.1} parent=1 // pred_check_branch
      %18 = sbr.rel (0) target = $region9
    $region8: #{tpu_custom_call.1} parent=1 // pred_region
      %19 = dma.done [#allocation3], 256
    $region9: #{tpu_custom_call.1} parent=1 // pred_fallthru
      _
    %v20 = vld [vmem:[#allocation2] sm:$0xff]
    %v21 = vld [vmem:[#allocation2 + $0x8] sm:$0xff]
    %v22 = vmax.f32 %v20, %v21
    %23 = vmax.xlane.f32.xlu0 %v22
    %v24 = vpop.xlane.xlu0 %23
    %v25 = vadd.f32 %v20, %v21
    %26 = vadd.xlane.f32.xlu0 %v25
    %v27 = vpop.xlane.xlu0 %26
    %v28 = vmul.f32 %v27, 0.00390625
    %v29 = vadd.f32 %v24, %v28
    %vm30 = vcmask 7168
    %31 = vst.msk [vmem:[%s1] sm:$0xff] %vm30, %v29
    // Predicated region
    $region10: #{tpu_custom_call.1} parent=1 // pred_check
      _
    $region11: #{tpu_custom_call.1} parent=1 // pred_check_branch
      %33 = sbr.rel (0) target = $region13
    $region12: #{tpu_custom_call.1} parent=1 // pred_region
      _
    $region13: #{tpu_custom_call.1} parent=1 // pred_fallthru
      _
    // Predicated region
    $region14: #{tpu_custom_call.1} parent=1 // pred_check
      _
    $region15: #{tpu_custom_call.1} parent=1 // pred_check_branch
      %35 = sbr.rel (0) target = $region17
    $region16: #{tpu_custom_call.1} parent=1 // pred_region
      _
    $region17: #{tpu_custom_call.1} parent=1 // pred_fallthru
      _
    %36 = vsyncpa [#allocation3], 1

</llo_original>
